<compile_context>
chip_gen: v7x
topology: tpu7x:2x2x1
jax: 0.10.0
libtpu: 0.0.40
codegen_flags: <defaults>
</compile_context>

<pallas_src>
import functools

import jax
import jax.numpy as jnp
from jax import lax
from jax.experimental import pallas as pl
from jax.experimental.pallas import tpu as pltpu

n_embd = 512      # fixed by the PyTorch module's __init__
block_size = 256  # only used to validate T <= block_size (tril buffer size)


def _pick_batch_block(B):
    """Largest Bb <= 8 dividing B, preferring an even grid of >= 4 steps."""
    divisors = [d for d in range(1, min(8, B) + 1) if B % d == 0]
    for bb in sorted(divisors, reverse=True):       # v7x: 2 TCs want even, >=4
        g = B // bb
        if g >= 4 and g % 2 == 0:
            return bb
    for bb in sorted(divisors, reverse=True):       # else at least 2 steps
        if B // bb >= 2:
            return bb
    return max(divisors)


def _pick_query_chunk(T):
    """Query-row chunk size: whole T when small, else 64/128-ish divisor."""
    if T <= 64:
        return T
    for tq in (64, 128, 32, 16, 8):
        if T % tq == 0:
            return tq
    return T  # fallback: no chunking


def _head_kernel(x_ref, wqkv_ref, o_ref, *, head_size, q_chunk):
    # x_ref block: (Bb, T, C); wqkv_ref: (C, 3H) bf16 (scale folded into q
    # columns); o_ref: (Bb, T, H) bf16.
    Bb, T, C = x_ref.shape
    H = head_size
    TQ = q_chunk
    nq = T // TQ

    # Fused QKV projection as ONE wide MXU matmul: (Bb*T, C) @ (C, 3H).
    # x is cast to bf16 in-kernel (no extra wrapper pass over HBM).
    x2d = x_ref[...].astype(jnp.bfloat16).reshape(Bb * T, C)
    qkv = jnp.dot(x2d, wqkv_ref[...],
                  preferred_element_type=jnp.float32)        # (Bb*T, 3H) f32
    qkv = qkv.reshape(Bb, T, 3 * H)

    neg_inf = jnp.float32(-jnp.inf)

    # Bb <= 8 is a static Python int -> small, bounded unroll.
    for b in range(Bb):
        q_all = qkv[b, :, 0:H].astype(jnp.bfloat16)          # (T, H), pre-scaled
        k_all = qkv[b, :, H:2 * H].astype(jnp.bfloat16)      # (T, H)
        v_all = qkv[b, :, 2 * H:3 * H].astype(jnp.bfloat16)  # (T, H)

        # Query-chunked, causally block-skipped attention.  The qi loop is a
        # static Python loop (nq <= 4 for T <= 256), so every shape below is
        # static and the score/softmax chain stays chunk-sized (vreg-friendly).
        for qi in range(nq):
            kw = (qi + 1) * TQ                               # covered key range
            q = q_all[qi * TQ:(qi + 1) * TQ]                 # (TQ, H)
            k_blk = k_all[:kw]                               # (kw, H)
            v_blk = v_all[:kw]                               # (kw, H)

            # scores = q @ k^T without materializing a transpose of k.
            scores = lax.dot_general(
                q, k_blk, dimension_numbers=(((1,), (1,)), ((), ())),
                preferred_element_type=jnp.float32)          # (TQ, kw) f32

            # Causal mask over the covered range only (fully-masked key blocks
            # beyond kw are never computed at all).
            row = lax.broadcasted_iota(jnp.int32, (TQ, kw), 0) + qi * TQ
            col = lax.broadcasted_iota(jnp.int32, (TQ, kw), 1)
            scores = jnp.where(col <= row, scores, neg_inf)

            # Numerically stable softmax; denominator reciprocal on the EUP.
            m = jnp.max(scores, axis=-1, keepdims=True)
            e = jnp.exp(scores - m)
            denom = jnp.sum(e, axis=-1, keepdims=True)
            p = (e * pl.reciprocal(denom, approx=True)).astype(jnp.bfloat16)

            # dropout skipped (inference / eval mode)

            out = jnp.dot(p, v_blk,
                          preferred_element_type=jnp.float32)  # (TQ, H) f32
            o_ref[b, qi * TQ:(qi + 1) * TQ, :] = out.astype(o_ref.dtype)


def fuse_head_weights(wq, wk, wv):
    """Call ONCE at init: fuse [q*scale | k | v] into a (C, 3H) bf16 matrix.

    The PyTorch forward scales scores by C**(-0.5) with C = n_embd; folding it
    into the q columns here removes the per-row multiply from the kernel.
    """
    C = wq.shape[0]
    scale = float(C) ** (-0.5)
    return jnp.concatenate([wq * scale, wk, wv], axis=1).astype(jnp.bfloat16)


def head_forward(x, wqkv, *, batch_block=None, out_dtype=jnp.bfloat16):
    """x: (B, T, C); wqkv: (C, 3H) bf16 from fuse_head_weights -> (B, T, H)."""
    B, T, C = x.shape
    assert T <= block_size, "T must not exceed block_size (tril buffer)"
    H3 = wqkv.shape[1]
    assert wqkv.shape[0] == C and H3 % 3 == 0
    H = H3 // 3

    Bb = _pick_batch_block(B) if batch_block is None else batch_block
    assert B % Bb == 0
    TQ = _pick_query_chunk(T)
    assert T % TQ == 0

    # Rough per-step VMEM budget: double-buffered x & out blocks, resident
    # bf16 wqkv, f32 qkv intermediate and the chunked score-chain temporaries.
    # For Bb <= 8, T <= 256 this stays well under v5e's 16 MiB scoped default
    # (and v7x's 32 MiB); only bump the scoped limit if a caller pushes past.
    est = (2 * Bb * T * C * x.dtype.itemsize
           + 2 * C * H3 * 2
           + 2 * Bb * T * H * jnp.dtype(out_dtype).itemsize
           + Bb * T * H3 * 4
           + 4 * TQ * T * 4)
    vmem_limit = min(2 * est, 64 * 1024 * 1024) if est > 12 * 1024 * 1024 else None

    kernel = functools.partial(_head_kernel, head_size=H, q_chunk=TQ)
    return pl.pallas_call(
        kernel,
        out_shape=jax.ShapeDtypeStruct((B, T, H), out_dtype),
        grid_spec=pltpu.PrefetchScalarGridSpec(
            num_scalar_prefetch=0,
            grid=(B // Bb,),
            in_specs=[
                pl.BlockSpec((Bb, T, C), lambda g: (g, 0, 0)),   # x (Bb batches)
                pl.BlockSpec((C, H3), lambda g: (0, 0)),         # fused Wqkv
            ],
            out_specs=pl.BlockSpec((Bb, T, H), lambda g: (g, 0, 0)),
        ),
        compiler_params=pltpu.CompilerParams(
            dimension_semantics=("parallel",),
            vmem_limit_bytes=vmem_limit,
        ),
    )(x, wqkv)


def _reference(x, wk, wq, wv):
    """Pure-JAX f32 reference mirroring the PyTorch forward (eval mode)."""
    B, T, C = x.shape
    k = x @ wk
    q = x @ wq
    v = x @ wv
    scores = jnp.einsum("btd,bsd->bts", q, k) * (C ** -0.5)
    tril = jnp.tril(jnp.ones((T, T), dtype=bool))
    scores = jnp.where(tril[None, :, :], scores, -jnp.inf)
    w = jax.nn.softmax(scores, axis=-1)
    return w @ v


if __name__ == "__main__":
    # Small shapes consistent with the module: n_embd is fixed at 512 by __init__.
    B, T, C = 2, 8, n_embd
    head_size = 64

    key = jax.random.PRNGKey(0)
    kx, kk, kq, kv = jax.random.split(key, 4)

    x = jax.random.normal(kx, (B, T, C), dtype=jnp.float32)
    # Deterministic nn.Linear-style init (uniform(-1/sqrt(C), 1/sqrt(C))),
    # stored already transposed to (C, head_size).
    bound = 1.0 / (C ** 0.5)
    wk = jax.random.uniform(kk, (C, head_size), jnp.float32, -bound, bound)
    wq = jax.random.uniform(kq, (C, head_size), jnp.float32, -bound, bound)
    wv = jax.random.uniform(kv, (C, head_size), jnp.float32, -bound, bound)

    # Weight fusion + scale folding done once at init (hoisted per review).
    wqkv = fuse_head_weights(wq, wk, wv)

    out = head_forward(x, wqkv)
    out = jax.block_until_ready(out)

    ref = _reference(x, wk, wq, wv)
    assert out.shape == (B, T, head_size)
    # bf16 MXU inputs + bf16 output (f32 accumulation) -> loosened tolerance.
    assert jnp.allclose(out.astype(jnp.float32), ref, atol=3e-2, rtol=3e-2), \
        "mismatch vs reference"

    print("KERNEL_OK")
</pallas_src>

<mosaic_0001>
module attributes {stable_mosaic.version = 11 : i64} {
  func.func @_head_kernel(%arg0: i32, %arg1: memref<1x8x512xf32, #tpu.memory_space<vmem>>, %arg2: memref<512x192xbf16, #tpu.memory_space<vmem>>, %arg3: memref<1x8x64xbf16, #tpu.memory_space<vmem>>) attributes {dimension_semantics = [#tpu.dimension_semantics<parallel>], iteration_bounds = array<i64: 2>, scalar_prefetch = 0 : i64, scratch_operands = 0 : i64, tpu.core_type = #tpu.core_type<tc>, window_params = [{transform_indices = @transform_0, window_bounds = array<i64: 1, 8, 512>}, {pipeline_mode = #tpu.pipeline_mode<synchronous>, transform_indices = @transform_1, window_bounds = array<i64: 512, 192>}, {transform_indices = @transform_2, window_bounds = array<i64: 1, 8, 64>}]} {
    %c0 = arith.constant 0 : index
    %c0_0 = arith.constant 0 : index
    %c0_1 = arith.constant 0 : index
    %0 = vector.load %arg1[%c0, %c0_0, %c0_1] : memref<1x8x512xf32, #tpu.memory_space<vmem>>, vector<1x8x512xf32>
    %1 = arith.truncf %0 : vector<1x8x512xf32> to vector<1x8x512xbf16>
    %2 = vector.shape_cast %1 : vector<1x8x512xbf16> to vector<8x512xbf16>
    %c0_2 = arith.constant 0 : index
    %c0_3 = arith.constant 0 : index
    %3 = vector.load %arg2[%c0_2, %c0_3] : memref<512x192xbf16, #tpu.memory_space<vmem>>, vector<512x192xbf16>
    %cst = arith.constant dense<0.000000e+00> : vector<8x192xf32>
    %4 = tpu.matmul %2, %3, %cst {dimension_numbers = #tpu.dot_dimension_numbers<[1], [0], [0], [1], [0, 0, 1, 1], [], []>} : vector<8x512xbf16>, vector<512x192xbf16>, vector<8x192xf32> -> vector<8x192xf32>
    %5 = vector.shape_cast %4 : vector<8x192xf32> to vector<1x8x192xf32>
    %6 = vector.extract_strided_slice %5 {offsets = [0, 0, 0], sizes = [1, 8, 64], strides = [1, 1, 1]} : vector<1x8x192xf32> to vector<1x8x64xf32>
    %7 = vector.shape_cast %6 : vector<1x8x64xf32> to vector<8x64xf32>
    %8 = arith.truncf %7 : vector<8x64xf32> to vector<8x64xbf16>
    %9 = vector.extract_strided_slice %5 {offsets = [0, 0, 64], sizes = [1, 8, 64], strides = [1, 1, 1]} : vector<1x8x192xf32> to vector<1x8x64xf32>
    %10 = vector.shape_cast %9 : vector<1x8x64xf32> to vector<8x64xf32>
    %11 = arith.truncf %10 : vector<8x64xf32> to vector<8x64xbf16>
    %12 = vector.extract_strided_slice %5 {offsets = [0, 0, 128], sizes = [1, 8, 64], strides = [1, 1, 1]} : vector<1x8x192xf32> to vector<1x8x64xf32>
    %13 = vector.shape_cast %12 : vector<1x8x64xf32> to vector<8x64xf32>
    %14 = arith.truncf %13 : vector<8x64xf32> to vector<8x64xbf16>
    %cst_4 = arith.constant dense<0.000000e+00> : vector<8x8xf32>
    %15 = tpu.matmul %8, %11, %cst_4 {dimension_numbers = #tpu.dot_dimension_numbers<[1], [1], [0], [0], [0, 0, 1, 0], [], []>} : vector<8x64xbf16>, vector<8x64xbf16>, vector<8x8xf32> -> vector<8x8xf32>
    %16 = tpu.iota {dimensions = array<i32: 0>} : vector<8x8xi32>
    %c0_i32 = arith.constant 0 : i32
    %17 = vector.broadcast %c0_i32 : i32 to vector<8x8xi32>
    %18 = arith.addi %16, %17 : vector<8x8xi32>
    %19 = tpu.iota {dimensions = array<i32: 1>} : vector<8x8xi32>
    %20 = arith.cmpi sle, %19, %18 : vector<8x8xi32>
    %cst_5 = arith.constant 0xFF800000 : f32
    %21 = vector.broadcast %cst_5 : f32 to vector<8x8xf32>
    %22 = arith.select %20, %15, %21 : vector<8x8xi1>, vector<8x8xf32>
    %cst_6 = arith.constant dense<0xFF800000> : vector<8xf32>
    %23 = vector.multi_reduction <maximumf>, %22, %cst_6 [1] : vector<8x8xf32> to vector<8xf32>
    %24 = vector.shape_cast %23 : vector<8xf32> to vector<8x1xf32>
    %25 = vector.broadcast %24 : vector<8x1xf32> to vector<8x8xf32>
    %26 = arith.subf %22, %25 : vector<8x8xf32>
    %27 = math.exp %26 : vector<8x8xf32>
    %cst_7 = arith.constant dense<0.000000e+00> : vector<8xf32>
    %28 = vector.multi_reduction <add>, %27, %cst_7 [1] : vector<8x8xf32> to vector<8xf32>
    %29 = vector.shape_cast %28 : vector<8xf32> to vector<8x1xf32>
    %30 = tpu.reciprocal %29 {approx = true} : vector<8x1xf32> -> vector<8x1xf32>
    %31 = vector.broadcast %30 : vector<8x1xf32> to vector<8x8xf32>
    %32 = arith.mulf %27, %31 : vector<8x8xf32>
    %33 = arith.truncf %32 : vector<8x8xf32> to vector<8x8xbf16>
    %cst_8 = arith.constant dense<0.000000e+00> : vector<8x64xf32>
    %34 = tpu.matmul %33, %14, %cst_8 {dimension_numbers = #tpu.dot_dimension_numbers<[1], [0], [0], [1], [0, 0, 1, 1], [], []>} : vector<8x8xbf16>, vector<8x64xbf16>, vector<8x64xf32> -> vector<8x64xf32>
    %35 = arith.truncf %34 : vector<8x64xf32> to vector<8x64xbf16>
    %c0_9 = arith.constant 0 : index
    %c0_10 = arith.constant 0 : index
    %c0_11 = arith.constant 0 : index
    %36 = vector.load %arg3[%c0_9, %c0_10, %c0_11] : memref<1x8x64xbf16, #tpu.memory_space<vmem>>, vector<1x8x64xbf16>
    %37 = vector.shape_cast %36 : vector<1x8x64xbf16> to vector<8x64xbf16>
    %38 = vector.shape_cast %35 : vector<8x64xbf16> to vector<1x8x64xbf16>
    tpu.vector_store %arg3[%c0_9, %c0_10, %c0_11], %38 {strides = array<i32>} : memref<1x8x64xbf16, #tpu.memory_space<vmem>>, vector<1x8x64xbf16>,
    return
  }
  func.func @transform_0(%arg0: i32) -> (i32, i32, i32) {
    %c0_i32 = arith.constant 0 : i32
    %c0_i32_0 = arith.constant 0 : i32
    %c0_i32_1 = arith.constant 0 : i32
    return %arg0, %c0_i32, %c0_i32_0 : i32, i32, i32
  }
  func.func @transform_1(%arg0: i32) -> (i32, i32) {
    %c0_i32 = arith.constant 0 : i32
    %c0_i32_0 = arith.constant 0 : i32
    %c0_i32_1 = arith.constant 0 : i32
    return %c0_i32, %c0_i32_0 : i32, i32
  }
  func.func @transform_2(%arg0: i32) -> (i32, i32, i32) {
    %c0_i32 = arith.constant 0 : i32
    %c0_i32_0 = arith.constant 0 : i32
    %c0_i32_1 = arith.constant 0 : i32
    return %arg0, %c0_i32, %c0_i32_0 : i32, i32, i32
  }
}

</mosaic_0001>

<llo_original>
// kernel: tpu_custom_call.1
$region0: #{tpu_custom_call.1}
  #allocation0 [shape = 'u32[]', space=smem, size = 0x4, offset = 0x4, fixed_abs, tag = 'smem constant byte address 0x4 - core index']
  #allocation1 [shape = 'u32[144,128]{1,0:T(1,128)}', space=vmem, size = 0x12000, scoped, tag = 'internal scratch']
  %s0 = inlined_call_operand.vmem [shape: f32[2,8,512], index: 0, kind: input, shape index: {}]
  %s1 = inlined_call_operand.vmem [shape: bf16[512,192], index: 1, kind: input, shape index: {}]
  %s2 = inlined_call_operand.hbm [shape: bf16[2,8,64], index: 2, kind: output, shape index: {}]
  %s3 = sld [smem:[#allocation0]]
  $region41: #{tpu_custom_call.1} parent=0
    _
  %s5 = ssub.s32 1, %s3
  %s6 = scalar_select 0, %s5, %s3
  $region1: #{tpu_custom_call.1} parent=0
    #allocation2 [shape = 'u8[4096]{0}', space=vmem, size = 0x1000, scoped, tag = 'output window, operand 0']
    #allocation3 [shape = 's32[2]{0}', space=sflag, size = 0x8, scoped, tag = 'scoped memory for tpu_custom_call.1']
    %7 = vsyncpa [#allocation3], 0
    %s8 = scalar_lea.sflag [#allocation3], 1
    %9 = vsyncpa %s8, 0
    loop: start=0, step=1, limit=4
    $region2: #{tpu_custom_call.1} parent=1 // loop_pre_header
      _
    $region3: #{tpu_custom_call.1} parent=1 // loop_header
      %s11 = sphi 0, %s15
      %p12 = scmp.ge.s32.totalorder %s11, 4
      %s21 = sphi 0, %s23
      %s24 = sphi 0, %s21
      %s25 = sphi 0, %s24
      %s41 = sphi 0, %s25
      %s45 = sphi 0, %s45
      %s47 = sphi 0, %s45
      %s48 = sphi 0, %s47
      %s62 = sphi 0, %s48
      %s68 = sphi 0, %s70
      %s71 = sphi 0, %s68
      %s72 = sphi 0, %s71
      %s88 = sphi 0, %s72
    $region4: #{tpu_custom_call.1} parent=1 // loop_header_branch
      %14 = sbr.rel (%p12) target = $region8
    $region5: #{tpu_custom_call.1} parent=1 // loop_body
      %s16 = ssub.s32 %s11, 1
      %s17 = ssub.s32 %s11, 2
      %s18 = sadd.s32 %s11, 1
      %s19 = ssub.s32 %s11, %s18
      %p20 = scmp.eq.s32.totalorder %s19, 0
      %s22 = sadd.s32 %s21, 1
      %s23 = scalar_select %p20, %s21, %s22
      %p26 = pneg %p20
      %p27 = scmp.eq.s32.totalorder %s11, 1
      %p28 = por %p26, %p27
      %p29 = scmp.ne.s32.totalorder %s21, %s24
      %p30 = scmp.eq.s32.totalorder %s11, 0
      %p31 = por %p29, %p30
      %p32 = scmp.ne.s32.totalorder %s21, %s24
      %p33 = scmp.eq.s32.totalorder %s16, 1
      %p34 = por %p32, %p33
      %p35 = scmp.ne.s32.totalorder %s24, %s25
      %p36 = scmp.eq.s32.totalorder %s16, 0
      %p37 = por %p35, %p36
      %p38 = scmp.ne.s32.totalorder %s24, %s25
      %p39 = scmp.eq.s32.totalorder %s17, 1
      %p40 = por %p38, %p39
      %p42 = scmp.ne.s32.totalorder %s25, %s41
      %p43 = scmp.eq.s32.totalorder %s17, 0
      %p44 = por %p42, %p43
      %s46 = sadd.s32 %s45, 1
      %p49 = scmp.eq.s32.totalorder %s11, 1
      %p50 = scmp.ne.s32.totalorder %s45, %s47
      %p51 = scmp.eq.s32.totalorder %s11, 0
      %p52 = por %p50, %p51
      %p53 = scmp.ne.s32.totalorder %s45, %s47
      %p54 = scmp.eq.s32.totalorder %s16, 1
      %p55 = por %p53, %p54
      %p56 = scmp.ne.s32.totalorder %s47, %s48
      %p57 = scmp.eq.s32.totalorder %s16, 0
      %p58 = por %p56, %p57
      %p59 = scmp.ne.s32.totalorder %s47, %s48
      %p60 = scmp.eq.s32.totalorder %s17, 1
      %p61 = por %p59, %p60
      %p63 = scmp.ne.s32.totalorder %s48, %s62
      %p64 = scmp.eq.s32.totalorder %s17, 0
      %p65 = por %p63, %p64
      %s66 = ssub.s32 %s11, %s18
      %p67 = scmp.eq.s32.totalorder %s66, 0
      %s69 = sadd.s32 %s68, 1
      %s70 = scalar_select %p67, %s68, %s69
      %p73 = pneg %p67
      %p74 = scmp.eq.s32.totalorder %s11, 1
      %p75 = por %p73, %p74
      %p76 = scmp.ne.s32.totalorder %s68, %s71
      %p77 = scmp.eq.s32.totalorder %s11, 0
      %p78 = por %p76, %p77
      %p79 = scmp.ne.s32.totalorder %s68, %s71
      %p80 = scmp.eq.s32.totalorder %s16, 1
      %p81 = por %p79, %p80
      %p82 = scmp.ne.s32.totalorder %s71, %s72
      %p83 = scmp.eq.s32.totalorder %s16, 0
      %p84 = por %p82, %p83
      %p85 = scmp.ne.s32.totalorder %s71, %s72
      %p86 = scmp.eq.s32.totalorder %s17, 1
      %p87 = por %p85, %p86
      %p89 = scmp.ne.s32.totalorder %s72, %s88
      %p90 = scmp.eq.s32.totalorder %s17, 0
      %p91 = por %p89, %p90
      %p92 = scmp.le.s32.totalorder 1, %s11
      %p93 = scmp.lt.s32.totalorder %s11, 3
      %p94 = pnand %p92, %p93
      %p95 = pneg %p94
      // Predicated region
      $region9: #{tpu_custom_call.1} parent=5 // pred_check
        _
      $region10: #{tpu_custom_call.1} parent=5 // pred_check_branch
        %97 = sbr.rel (%p94) target = $region12
      $region11: #{tpu_custom_call.1} parent=5 // pred_region
        %s98 = ssub.s32 %s11, 1
        // Predicated region
        $region13: #{tpu_custom_call.1} parent=11 // pred_check
          %p99 = pneg %p58
        $region14: #{tpu_custom_call.1} parent=11 // pred_check_branch
          %101 = sbr.rel (%p99) target = $region16
        $region15: #{tpu_custom_call.1} parent=11 // pred_region
          _
        $region16: #{tpu_custom_call.1} parent=11 // pred_fallthru
          _
      $region12: #{tpu_custom_call.1} parent=5 // pred_fallthru
        _
      %p102 = scmp.lt.s32.totalorder %s11, 2
      // Predicated region
      $region17: #{tpu_custom_call.1} parent=5 // pred_check
        %p103 = pneg %p102
      $region18: #{tpu_custom_call.1} parent=5 // pred_check_branch
        %105 = sbr.rel (%p103) target = $region20
      $region19: #{tpu_custom_call.1} parent=5 // pred_region
        // Predicated region
        $region21: #{tpu_custom_call.1} parent=19 // pred_check
          %p106 = pneg %p31
        $region22: #{tpu_custom_call.1} parent=19 // pred_check_branch
          %108 = sbr.rel (%p106) target = $region24
        $region23: #{tpu_custom_call.1} parent=19 // pred_region
          %p109 = scmp.lt.s32.totalorder %s11, 1
          %s110 = scalar_select %p109, %s11, 1
          %s111 = smul.addr %s110, 4
          %s112 = smul.addr %s111, 8
          %s113 = scalar_lea.vmem %s0, %s112
        $region24: #{tpu_custom_call.1} parent=19 // pred_fallthru
          _
      $region20: #{tpu_custom_call.1} parent=5 // pred_fallthru
        _
      %p114 = scmp.le.s32.totalorder 1, %s11
      %p115 = scmp.lt.s32.totalorder %s11, 3
      %p116 = pnand %p114, %p115
      %p117 = pneg %p116
      // Predicated region
      $region25: #{tpu_custom_call.1} parent=5 // pred_check
        _
      $region26: #{tpu_custom_call.1} parent=5 // pred_check_branch
        %119 = sbr.rel (%p116) target = $region28
      $region27: #{tpu_custom_call.1} parent=5 // pred_region
        %s120 = ssub.s32 %s11, 1
        %p121 = scmp.lt.s32.totalorder %s16, 1
        %s122 = scalar_select %p121, %s16, 1
        %s123 = smul.addr %s122, 4
        %s124 = smul.addr %s123, 8
        %s125 = scalar_lea.vmem %s0, %s124
        %p126 = pneg %p37
        %p127 = pneg %p34
        %p128 = pneg %p58
        %p129 = pneg %p55
        %p130 = pneg %p84
        %p131 = pneg %p81
        %s132 = sand.u32 %s71, 1
        %s133 = scalar_lea.sflag [#allocation3], %s132
        %s134 = sand.u32 %s71, 1
        %s135 = smul.addr %s134, 4
        %s136 = scalar_lea.vmem [#allocation2], %s135
        %p137 = scmp.lt.s32.totalorder %s16, 1
        %s138 = scalar_select %p137, %s16, 1
        %s139 = smul.addr %s138, 4
        %s140 = smul.addr %s139, 8
        %s141 = scalar_lea.vmem %s0, %s140
        %v143 = vld [vmem:[%s141] sm:$0xff]
        %v144 = vld [vmem:[%s141 + $0x8] sm:$0xff]
        %v145 = vld [vmem:[%s141 + $0x10] sm:$0xff]
        %v146 = vld [vmem:[%s141 + $0x18] sm:$0xff]
        %v147 = vpack.c.bf16 %v143, %v143
        %v148 = vpack.c.bf16 %v144, %v144
        %v149 = vpack.c.bf16 %v145, %v145
        %v150 = vpack.c.bf16 %v146, %v146
        %v151 = vld [vmem:[%s1] sm:$0xff]
        %v152 = vld [vmem:[%s1 + $0x8] sm:$0xff]
        %v153 = vld [vmem:[%s1 + $0x10] sm:$0xff]
        %v154 = vld [vmem:[%s1 + $0x18] sm:$0xff]
        %v155 = vld [vmem:[%s1 + $0x20] sm:$0xff]
        %v156 = vld [vmem:[%s1 + $0x28] sm:$0xff]
        %v157 = vld [vmem:[%s1 + $0x30] sm:$0xff]
        %v158 = vld [vmem:[%s1 + $0x38] sm:$0xff]
        %v159 = vld [vmem:[%s1 + $0x40] sm:$0xff]
        %v160 = vld [vmem:[%s1 + $0x48] sm:$0xff]
        %v161 = vld [vmem:[%s1 + $0x50] sm:$0xff]
        %v162 = vld [vmem:[%s1 + $0x58] sm:$0xff]
        %v163 = vld [vmem:[%s1 + $0x60] sm:$0xff]
        %v164 = vld [vmem:[%s1 + $0x68] sm:$0xff]
        %v165 = vld [vmem:[%s1 + $0x70] sm:$0xff]
        %v166 = vld [vmem:[%s1 + $0x78] sm:$0xff]
        %v167 = vld [vmem:[%s1 + $0x80] sm:$0xff]
        %v168 = vld [vmem:[%s1 + $0x88] sm:$0xff]
        %v169 = vld [vmem:[%s1 + $0x90] sm:$0xff]
        %v170 = vld [vmem:[%s1 + $0x98] sm:$0xff]
        %v171 = vld [vmem:[%s1 + $0xa0] sm:$0xff]
        %v172 = vld [vmem:[%s1 + $0xa8] sm:$0xff]
        %v173 = vld [vmem:[%s1 + $0xb0] sm:$0xff]
        %v174 = vld [vmem:[%s1 + $0xb8] sm:$0xff]
        %v175 = vld [vmem:[%s1 + $0xc0] sm:$0xff]
        %v176 = vld [vmem:[%s1 + $0xc8] sm:$0xff]
        %v177 = vld [vmem:[%s1 + $0xd0] sm:$0xff]
        %v178 = vld [vmem:[%s1 + $0xd8] sm:$0xff]
        %v179 = vld [vmem:[%s1 + $0xe0] sm:$0xff]
        %v180 = vld [vmem:[%s1 + $0xe8] sm:$0xff]
        %v181 = vld [vmem:[%s1 + $0xf0] sm:$0xff]
        %v182 = vld [vmem:[%s1 + $0xf8] sm:$0xff]
        %v183 = vld [vmem:[%s1 + $0x100] sm:$0xff]
        %v184 = vld [vmem:[%s1 + $0x108] sm:$0xff]
        %v185 = vld [vmem:[%s1 + $0x110] sm:$0xff]
        %v186 = vld [vmem:[%s1 + $0x118] sm:$0xff]
        %v187 = vld [vmem:[%s1 + $0x120] sm:$0xff]
        %v188 = vld [vmem:[%s1 + $0x128] sm:$0xff]
        %v189 = vld [vmem:[%s1 + $0x130] sm:$0xff]
        %v190 = vld [vmem:[%s1 + $0x138] sm:$0xff]
        %v191 = vld [vmem:[%s1 + $0x140] sm:$0xff]
        %v192 = vld [vmem:[%s1 + $0x148] sm:$0xff]
        %v193 = vld [vmem:[%s1 + $0x150] sm:$0xff]
        %v194 = vld [vmem:[%s1 + $0x158] sm:$0xff]
        %v195 = vld [vmem:[%s1 + $0x160] sm:$0xff]
        %v196 = vld [vmem:[%s1 + $0x168] sm:$0xff]
        %v197 = vld [vmem:[%s1 + $0x170] sm:$0xff]
        %v198 = vld [vmem:[%s1 + $0x178] sm:$0xff]
        %v199 = vld [vmem:[%s1 + $0x180] sm:$0xff]
        %v200 = vld [vmem:[%s1 + $0x188] sm:$0xff]
        %v201 = vld [vmem:[%s1 + $0x190] sm:$0xff]
        %v202 = vld [vmem:[%s1 + $0x198] sm:$0xff]
        %v203 = vld [vmem:[%s1 + $0x1a0] sm:$0xff]
        %v204 = vld [vmem:[%s1 + $0x1a8] sm:$0xff]
        %v205 = vld [vmem:[%s1 + $0x1b0] sm:$0xff]
        %v206 = vld [vmem:[%s1 + $0x1b8] sm:$0xff]
        %v207 = vld [vmem:[%s1 + $0x1c0] sm:$0xff]
        %v208 = vld [vmem:[%s1 + $0x1c8] sm:$0xff]
        %v209 = vld [vmem:[%s1 + $0x1d0] sm:$0xff]
        %v210 = vld [vmem:[%s1 + $0x1d8] sm:$0xff]
        %v211 = vld [vmem:[%s1 + $0x1e0] sm:$0xff]
        %v212 = vld [vmem:[%s1 + $0x1e8] sm:$0xff]
        %v213 = vld [vmem:[%s1 + $0x1f0] sm:$0xff]
        %v214 = vld [vmem:[%s1 + $0x1f8] sm:$0xff]
        %v279 = vunpack.c.l.b16 %v151
        %v280 = vunpack.c.h.b16 %v151
        %v281 = vunpack.c.l.b16 %v152
        %v282 = vunpack.c.h.b16 %v152
        %v283 = vunpack.c.l.b16 %v153
        %v284 = vunpack.c.h.b16 %v153
        %v285 = vunpack.c.l.b16 %v154
        %v286 = vunpack.c.h.b16 %v154
        %v287 = vunpack.c.l.b16 %v155
        %v288 = vunpack.c.h.b16 %v155
        %v289 = vunpack.c.l.b16 %v156
        %v290 = vunpack.c.h.b16 %v156
        %v291 = vunpack.c.l.b16 %v157
        %v292 = vunpack.c.h.b16 %v157
        %v293 = vunpack.c.l.b16 %v158
        %v294 = vunpack.c.h.b16 %v158
        %v295 = vunpack.c.l.b16 %v159
        %v296 = vunpack.c.h.b16 %v159
        %v297 = vunpack.c.l.b16 %v160
        %v298 = vunpack.c.h.b16 %v160
        %v299 = vunpack.c.l.b16 %v161
        %v300 = vunpack.c.h.b16 %v161
        %v301 = vunpack.c.l.b16 %v162
        %v302 = vunpack.c.h.b16 %v162
        %v303 = vunpack.c.l.b16 %v163
        %v304 = vunpack.c.h.b16 %v163
        %v305 = vunpack.c.l.b16 %v164
        %v306 = vunpack.c.h.b16 %v164
        %v307 = vunpack.c.l.b16 %v165
        %v308 = vunpack.c.h.b16 %v165
        %v309 = vunpack.c.l.b16 %v166
        %v310 = vunpack.c.h.b16 %v166
        %v311 = vunpack.c.l.b16 %v167
        %v312 = vunpack.c.h.b16 %v167
        %v313 = vunpack.c.l.b16 %v168
        %v314 = vunpack.c.h.b16 %v168
        %v315 = vunpack.c.l.b16 %v169
        %v316 = vunpack.c.h.b16 %v169
        %v317 = vunpack.c.l.b16 %v170
        %v318 = vunpack.c.h.b16 %v170
        %v319 = vunpack.c.l.b16 %v171
        %v320 = vunpack.c.h.b16 %v171
        %v321 = vunpack.c.l.b16 %v172
        %v322 = vunpack.c.h.b16 %v172
        %v323 = vunpack.c.l.b16 %v173
        %v324 = vunpack.c.h.b16 %v173
        %v325 = vunpack.c.l.b16 %v174
        %v326 = vunpack.c.h.b16 %v174
        %v327 = vunpack.c.l.b16 %v175
        %v328 = vunpack.c.h.b16 %v175
        %v329 = vunpack.c.l.b16 %v176
        %v330 = vunpack.c.h.b16 %v176
        %v331 = vunpack.c.l.b16 %v177
        %v332 = vunpack.c.h.b16 %v177
        %v333 = vunpack.c.l.b16 %v178
        %v334 = vunpack.c.h.b16 %v178
        %v335 = vunpack.c.l.b16 %v179
        %v336 = vunpack.c.h.b16 %v179
        %v337 = vunpack.c.l.b16 %v180
        %v338 = vunpack.c.h.b16 %v180
        %v339 = vunpack.c.l.b16 %v181
        %v340 = vunpack.c.h.b16 %v181
        %v341 = vunpack.c.l.b16 %v182
        %v342 = vunpack.c.h.b16 %v182
        %v343 = vunpack.c.l.b16 %v183
        %v344 = vunpack.c.h.b16 %v183
        %v345 = vunpack.c.l.b16 %v184
        %v346 = vunpack.c.h.b16 %v184
        %v347 = vunpack.c.l.b16 %v185
        %v348 = vunpack.c.h.b16 %v185
        %v349 = vunpack.c.l.b16 %v186
        %v350 = vunpack.c.h.b16 %v186
        %v351 = vunpack.c.l.b16 %v187
        %v352 = vunpack.c.h.b16 %v187
        %v353 = vunpack.c.l.b16 %v188
        %v354 = vunpack.c.h.b16 %v188
        %v355 = vunpack.c.l.b16 %v189
        %v356 = vunpack.c.h.b16 %v189
        %v357 = vunpack.c.l.b16 %v190
        %v358 = vunpack.c.h.b16 %v190
        %v359 = vunpack.c.l.b16 %v191
        %v360 = vunpack.c.h.b16 %v191
        %v361 = vunpack.c.l.b16 %v192
        %v362 = vunpack.c.h.b16 %v192
        %v363 = vunpack.c.l.b16 %v193
        %v364 = vunpack.c.h.b16 %v193
        %v365 = vunpack.c.l.b16 %v194
        %v366 = vunpack.c.h.b16 %v194
        %v367 = vunpack.c.l.b16 %v195
        %v368 = vunpack.c.h.b16 %v195
        %v369 = vunpack.c.l.b16 %v196
        %v370 = vunpack.c.h.b16 %v196
        %v371 = vunpack.c.l.b16 %v197
        %v372 = vunpack.c.h.b16 %v197
        %v373 = vunpack.c.l.b16 %v198
        %v374 = vunpack.c.h.b16 %v198
        %v375 = vunpack.c.l.b16 %v199
        %v376 = vunpack.c.h.b16 %v199
        %v377 = vunpack.c.l.b16 %v200
        %v378 = vunpack.c.h.b16 %v200
        %v379 = vunpack.c.l.b16 %v201
        %v380 = vunpack.c.h.b16 %v201
        %v381 = vunpack.c.l.b16 %v202
        %v382 = vunpack.c.h.b16 %v202
        %v383 = vunpack.c.l.b16 %v203
        %v384 = vunpack.c.h.b16 %v203
        %v385 = vunpack.c.l.b16 %v204
        %v386 = vunpack.c.h.b16 %v204
        %v387 = vunpack.c.l.b16 %v205
        %v388 = vunpack.c.h.b16 %v205
        %v389 = vunpack.c.l.b16 %v206
        %v390 = vunpack.c.h.b16 %v206
        %v391 = vunpack.c.l.b16 %v207
        %v392 = vunpack.c.h.b16 %v207
        %v393 = vunpack.c.l.b16 %v208
        %v394 = vunpack.c.h.b16 %v208
        %v395 = vunpack.c.l.b16 %v209
        %v396 = vunpack.c.h.b16 %v209
        %v397 = vunpack.c.l.b16 %v210
        %v398 = vunpack.c.h.b16 %v210
        %v399 = vunpack.c.l.b16 %v211
        %v400 = vunpack.c.h.b16 %v211
        %v401 = vunpack.c.l.b16 %v212
        %v402 = vunpack.c.h.b16 %v212
        %v403 = vunpack.c.l.b16 %v213
        %v404 = vunpack.c.h.b16 %v213
        %v405 = vunpack.c.l.b16 %v214
        %v406 = vunpack.c.h.b16 %v214
        %v407 = vpack.c.b16 %v281, %v279
        %v408 = vpack.c.b16 %v282, %v280
        %v409 = vpack.c.b16 %v285, %v283
        %v410 = vpack.c.b16 %v286, %v284
        %v411 = vpack.c.b16 %v289, %v287
        %v412 = vpack.c.b16 %v290, %v288
        %v413 = vpack.c.b16 %v293, %v291
        %v414 = vpack.c.b16 %v294, %v292
        %v415 = vpack.c.b16 %v297, %v295
        %v416 = vpack.c.b16 %v298, %v296
        %v417 = vpack.c.b16 %v301, %v299
        %v418 = vpack.c.b16 %v302, %v300
        %v419 = vpack.c.b16 %v305, %v303
        %v420 = vpack.c.b16 %v306, %v304
        %v421 = vpack.c.b16 %v309, %v307
        %v422 = vpack.c.b16 %v310, %v308
        %v423 = vpack.c.b16 %v313, %v311
        %v424 = vpack.c.b16 %v314, %v312
        %v425 = vpack.c.b16 %v317, %v315
        %v426 = vpack.c.b16 %v318, %v316
        %v427 = vpack.c.b16 %v321, %v319
        %v428 = vpack.c.b16 %v322, %v320
        %v429 = vpack.c.b16 %v325, %v323
        %v430 = vpack.c.b16 %v326, %v324
        %v431 = vpack.c.b16 %v329, %v327
        %v432 = vpack.c.b16 %v330, %v328
        %v433 = vpack.c.b16 %v333, %v331
        %v434 = vpack.c.b16 %v334, %v332
        %v435 = vpack.c.b16 %v337, %v335
        %v436 = vpack.c.b16 %v338, %v336
        %v437 = vpack.c.b16 %v341, %v339
        %v438 = vpack.c.b16 %v342, %v340
        %v439 = vpack.c.b16 %v345, %v343
        %v440 = vpack.c.b16 %v346, %v344
        %v441 = vpack.c.b16 %v349, %v347
        %v442 = vpack.c.b16 %v350, %v348
        %v443 = vpack.c.b16 %v353, %v351
        %v444 = vpack.c.b16 %v354, %v352
        %v445 = vpack.c.b16 %v357, %v355
        %v446 = vpack.c.b16 %v358, %v356
        %v447 = vpack.c.b16 %v361, %v359
        %v448 = vpack.c.b16 %v362, %v360
        %v449 = vpack.c.b16 %v365, %v363
        %v450 = vpack.c.b16 %v366, %v364
        %v451 = vpack.c.b16 %v369, %v367
        %v452 = vpack.c.b16 %v370, %v368
        %v453 = vpack.c.b16 %v373, %v371
        %v454 = vpack.c.b16 %v374, %v372
        %v455 = vpack.c.b16 %v377, %v375
        %v456 = vpack.c.b16 %v378, %v376
        %v457 = vpack.c.b16 %v381, %v379
        %v458 = vpack.c.b16 %v382, %v380
        %v459 = vpack.c.b16 %v385, %v383
        %v460 = vpack.c.b16 %v386, %v384
        %v461 = vpack.c.b16 %v389, %v387
        %v462 = vpack.c.b16 %v390, %v388
        %v463 = vpack.c.b16 %v393, %v391
        %v464 = vpack.c.b16 %v394, %v392
        %v465 = vpack.c.b16 %v397, %v395
        %v466 = vpack.c.b16 %v398, %v396
        %v467 = vpack.c.b16 %v401, %v399
        %v468 = vpack.c.b16 %v402, %v400
        %v469 = vpack.c.b16 %v405, %v403
        %v470 = vpack.c.b16 %v406, %v404
        %535 = vmatprep.subr.bf16.mxu0 %v408
        %536 = vmatpush1.bf16.msra.mxu0 %v407
        %537 = vmatprep.subr.bf16.mxu0 %v410
        %538 = vmatpush1.bf16.msra.mxu0 %v409
        %539 = vmatprep.subr.bf16.mxu0 %v412
        %540 = vmatpush1.bf16.msra.mxu0 %v411
        %541 = vmatprep.subr.bf16.mxu0 %v414
        %542 = vmatpush1.bf16.msra.mxu0 %v413
        %543 = vmatprep.subr.bf16.mxu0 %v416
        %544 = vmatpush1.bf16.msra.mxu0 %v415
        %545 = vmatprep.subr.bf16.mxu0 %v418
        %546 = vmatpush1.bf16.msra.mxu0 %v417
        %547 = vmatprep.subr.bf16.mxu0 %v420
        %548 = vmatpush1.bf16.msra.mxu0 %v419
        %549 = vmatprep.subr.bf16.mxu0 %v422
        %550 = vmatpush1.bf16.msra.mxu0 %v421
        %551 = vmatprep.subr.bf16.mxu0 %v424
        %552 = vmatpush1.bf16.msra.mxu0 %v423
        %553 = vmatprep.subr.bf16.mxu0 %v426
        %554 = vmatpush1.bf16.msra.mxu0 %v425
        %555 = vmatprep.subr.bf16.mxu0 %v428
        %556 = vmatpush1.bf16.msra.mxu0 %v427
        %557 = vmatprep.subr.bf16.mxu0 %v430
        %558 = vmatpush1.bf16.msra.mxu0 %v429
        %559 = vmatprep.subr.bf16.mxu0 %v432
        %560 = vmatpush1.bf16.msra.mxu0 %v431
        %561 = vmatprep.subr.bf16.mxu0 %v434
        %562 = vmatpush1.bf16.msra.mxu0 %v433
        %563 = vmatprep.subr.bf16.mxu0 %v436
        %564 = vmatpush1.bf16.msra.mxu0 %v435
        %565 = vmatprep.subr.bf16.mxu0 %v438
        %566 = vmatpush1.bf16.msra.mxu0 %v437
        %567 = vmatprep.mubr.bf16.mxu0 %v148
        %568 = vmatmul.mubr.bf16.gmra.mrb[0].mxu0 %v147
        %v569 = vpop.f32.mrb[0].mxu0
        %v570 = vadd.f32 0.0, %v569
        %v571 = vpop.f32.mrb[0].mxu0
        %v572 = vadd.f32 0.0, %v571
        %v573 = vpop.f32.mrb[0].mxu0
        %v574 = vpop.f32.mrb[0].mxu0
        %575 = vdwg.mxu0
        %576 = vmatprep.subr.bf16.mxu0 %v440
        %577 = vmatpush1.bf16.msra.mxu0 %v439
        %578 = vmatprep.subr.bf16.mxu0 %v442
        %579 = vmatpush1.bf16.msra.mxu0 %v441
        %580 = vmatprep.subr.bf16.mxu0 %v444
        %581 = vmatpush1.bf16.msra.mxu0 %v443
        %582 = vmatprep.subr.bf16.mxu0 %v446
        %583 = vmatpush1.bf16.msra.mxu0 %v445
        %584 = vmatprep.subr.bf16.mxu0 %v448
        %585 = vmatpush1.bf16.msra.mxu0 %v447
        %586 = vmatprep.subr.bf16.mxu0 %v450
        %587 = vmatpush1.bf16.msra.mxu0 %v449
        %588 = vmatprep.subr.bf16.mxu0 %v452
        %589 = vmatpush1.bf16.msra.mxu0 %v451
        %590 = vmatprep.subr.bf16.mxu0 %v454
        %591 = vmatpush1.bf16.msra.mxu0 %v453
        %592 = vmatprep.subr.bf16.mxu0 %v456
        %593 = vmatpush1.bf16.msra.mxu0 %v455
        %594 = vmatprep.subr.bf16.mxu0 %v458
        %595 = vmatpush1.bf16.msra.mxu0 %v457
        %596 = vmatprep.subr.bf16.mxu0 %v460
        %597 = vmatpush1.bf16.msra.mxu0 %v459
        %598 = vmatprep.subr.bf16.mxu0 %v462
        %599 = vmatpush1.bf16.msra.mxu0 %v461
        %600 = vmatprep.subr.bf16.mxu0 %v464
        %601 = vmatpush1.bf16.msra.mxu0 %v463
        %602 = vmatprep.subr.bf16.mxu0 %v466
        %603 = vmatpush1.bf16.msra.mxu0 %v465
        %604 = vmatprep.subr.bf16.mxu0 %v468
        %605 = vmatpush1.bf16.msra.mxu0 %v467
        %606 = vmatprep.subr.bf16.mxu0 %v470
        %607 = vmatpush1.bf16.msra.mxu0 %v469
        %608 = vmatprep.mubr.bf16.mxu0 %v150
        %609 = vmatmul.mubr.bf16.gmra.mrb[0].mxu0 %v149
        %v610 = vpop.f32.mrb[0].mxu0
        %v611 = vadd.f32 %v570, %v610
        %v612 = vpop.f32.mrb[0].mxu0
        %v613 = vadd.f32 %v572, %v612
        %v614 = vpop.f32.mrb[0].mxu0
        %v615 = vpop.f32.mrb[0].mxu0
        %616 = vdwg.mxu0
        %v617 = vpack.c.bf16 %v611, %v611
        %v618 = vpack.c.bf16 %v613, %v613
        %620 = vrot.lane.b32.xlu0 %v617, 64
        %v621 = vpop.permute.xlu0 %620
        %vm622 = vcmask 523264
        %v624 = vsel %vm622, %v617, 0
        %v627 = vsel %vm622, %v621, 0
        %629 = vmatprep.subr.bf16.mxu0 0
        %630 = vmatpush1.bf16.xpose.msra.mxu0 %v627
        %631 = vmatprep.subr.bf16.mxu0 0
        %632 = vmatpush1.bf16.xpose.msra.mxu0 0
        %633 = vmatprep.subr.bf16.mxu0 0
        %634 = vmatpush1.bf16.xpose.msra.mxu0 0
        %635 = vmatprep.subr.bf16.mxu0 0
        %636 = vmatpush1.bf16.xpose.msra.mxu0 0
        %637 = vmatprep.subr.bf16.mxu0 0
        %638 = vmatpush1.bf16.xpose.msra.mxu0 0
        %639 = vmatprep.subr.bf16.mxu0 0
        %640 = vmatpush1.bf16.xpose.msra.mxu0 0
        %641 = vmatprep.subr.bf16.mxu0 0
        %642 = vmatpush1.bf16.xpose.msra.mxu0 0
        %643 = vmatprep.subr.bf16.mxu0 0
        %644 = vmatpush1.bf16.xpose.msra.mxu0 0
        %645 = vmatprep.subr.bf16.mxu0 0
        %646 = vmatpush1.bf16.xpose.msra.mxu0 0
        %647 = vmatprep.subr.bf16.mxu0 0
        %648 = vmatpush1.bf16.xpose.msra.mxu0 0
        %649 = vmatprep.subr.bf16.mxu0 0
        %650 = vmatpush1.bf16.xpose.msra.mxu0 0
        %651 = vmatprep.subr.bf16.mxu0 0
        %652 = vmatpush1.bf16.xpose.msra.mxu0 0
        %653 = vmatprep.subr.bf16.mxu0 0
        %654 = vmatpush1.bf16.xpose.msra.mxu0 0
        %655 = vmatprep.subr.bf16.mxu0 0
        %656 = vmatpush1.bf16.xpose.msra.mxu0 0
        %657 = vmatprep.subr.bf16.mxu0 0
        %658 = vmatpush1.bf16.xpose.msra.mxu0 0
        %659 = vmatprep.subr.bf16.mxu0 0
        %660 = vmatpush1.bf16.xpose.msra.mxu0 0
        %661 = vmatprep.mubr.bf16.mxu0 0
        %662 = vmatmul.mubr.bf16.gmra.mrb[0].mxu0 %v624
        %v663 = vpop.f32.mrb[0].mxu0
        %v664 = vadd.f32 0.0, %v663
        %v665 = vpop.f32.mrb[0].mxu0
        %v666 = vpop.f32.mrb[0].mxu0
        %v667 = vpop.f32.mrb[0].mxu0
        %668 = vdwg.mxu0
        %v669 = vlaneseq
        %v670 = vshrl.u32 %v669, 7
        %v671 = vlaneseq
        %v672 = vand.u32 %v671, 127
        %vm673 = vcmp.le.s32.totalorder %v672, %v670
        %v674 = vsel %vm673, %v664, -inf
        %vm675 = vcmask 64512
        %v676 = vsel %vm675, %v674, -inf
        %677 = vmax.xlane.f32.xlu0 %v676
        %v678 = vpop.xlane.xlu0 %677
        %v679 = vsub.f32 %v674, %v678
        %v680 = vmul.f32 %v679, 1.442695
        %v681 = vpow.pop %v680
        %v682 = vsel %vm675, %v681, 0.0
        %683 = vadd.xlane.f32.xlu0 %v682
        %v684 = vpop.xlane.xlu0 %683
        %v685 = vrcp.pop %v684
        %v686 = vmul.f32 %v681, %v685
        %v687 = vpack.c.bf16 %v686, %v686
        %v689 = vsel %vm675, %v687, 0
        %vm691 = vcmask 1043456
        %v693 = vsel %vm691, %v618, 0
        %695 = vmatprep.subr.bf16.mxu0 0
        %696 = vmatpush1.bf16.msra.mxu0 %v693
        %697 = vmatprep.subr.bf16.mxu0 0
        %698 = vmatpush1.bf16.msra.mxu0 0
        %699 = vmatprep.subr.bf16.mxu0 0
        %700 = vmatpush1.bf16.msra.mxu0 0
        %701 = vmatprep.subr.bf16.mxu0 0
        %702 = vmatpush1.bf16.msra.mxu0 0
        %703 = vmatprep.subr.bf16.mxu0 0
        %704 = vmatpush1.bf16.msra.mxu0 0
        %705 = vmatprep.subr.bf16.mxu0 0
        %706 = vmatpush1.bf16.msra.mxu0 0
        %707 = vmatprep.subr.bf16.mxu0 0
        %708 = vmatpush1.bf16.msra.mxu0 0
        %709 = vmatprep.subr.bf16.mxu0 0
        %710 = vmatpush1.bf16.msra.mxu0 0
        %711 = vmatprep.subr.bf16.mxu0 0
        %712 = vmatpush1.bf16.msra.mxu0 0
        %713 = vmatprep.subr.bf16.mxu0 0
        %714 = vmatpush1.bf16.msra.mxu0 0
        %715 = vmatprep.subr.bf16.mxu0 0
        %716 = vmatpush1.bf16.msra.mxu0 0
        %717 = vmatprep.subr.bf16.mxu0 0
        %718 = vmatpush1.bf16.msra.mxu0 0
        %719 = vmatprep.subr.bf16.mxu0 0
        %720 = vmatpush1.bf16.msra.mxu0 0
        %721 = vmatprep.subr.bf16.mxu0 0
        %722 = vmatpush1.bf16.msra.mxu0 0
        %723 = vmatprep.subr.bf16.mxu0 0
        %724 = vmatpush1.bf16.msra.mxu0 0
        %725 = vmatprep.subr.bf16.mxu0 0
        %726 = vmatpush1.bf16.msra.mxu0 0
        %727 = vmatprep.mubr.bf16.mxu0 0
        %728 = vmatmul.mubr.bf16.gmra.mrb[0].mxu0 %v689
        %v729 = vpop.f32.mrb[0].mxu0
        %v730 = vadd.f32 0.0, %v729
        %v731 = vpop.f32.mrb[0].mxu0
        %v732 = vpop.f32.mrb[0].mxu0
        %v733 = vpop.f32.mrb[0].mxu0
        %734 = vdwg.mxu0
        %v735 = vpack.c.bf16 %v730, %v730
        %vm736 = vcmask 519168
        %737 = vst.msk [vmem:[%s136] sm:$0xf] %vm736, %v735
        %s738 = sand.u32 %s71, 1
        %s739 = scalar_lea.sflag [#allocation3], %s738
        %s740 = sand.u32 %s71, 1
        %s741 = smul.addr %s740, 4
        %s742 = scalar_lea.vmem [#allocation2], %s741
        // Predicated region
        $region29: #{tpu_custom_call.1} parent=27 // pred_check
          %p743 = pneg %p81
        $region30: #{tpu_custom_call.1} parent=27 // pred_check_branch
          %745 = sbr.rel (%p743) target = $region32
        $region31: #{tpu_custom_call.1} parent=27 // pred_region
          %s747 = ssub.s32 64, 64
          %748 = vsyncadd %s739, %s747
          %s749 = smul.addr %s16, 64
          %s750 = scalar_lea.hbm %s2, %s749
          %s752 = sshll.u32 %s742, 4
          %s753 = int_to_ptr.vmem [resolvable:$true] %s752
          %755 = dma.vmem_to_hbm [thread:$0]  %s753, 64, %s750, %s739
        $region32: #{tpu_custom_call.1} parent=27 // pred_fallthru
          _
      $region28: #{tpu_custom_call.1} parent=5 // pred_fallthru
        _
      %p756 = scmp.le.s32.totalorder 2, %s11
      // Predicated region
      $region33: #{tpu_custom_call.1} parent=5 // pred_check
        %p757 = pneg %p756
      $region34: #{tpu_custom_call.1} parent=5 // pred_check_branch
        %759 = sbr.rel (%p757) target = $region36
      $region35: #{tpu_custom_call.1} parent=5 // pred_region
        %s760 = ssub.s32 %s11, 2
        // Predicated region
        $region37: #{tpu_custom_call.1} parent=35 // pred_check
          %p761 = pneg %p87
        $region38: #{tpu_custom_call.1} parent=35 // pred_check_branch
          %763 = sbr.rel (%p761) target = $region40
        $region39: #{tpu_custom_call.1} parent=35 // pred_region
          %s764 = sand.u32 %s72, 1
          %s765 = scalar_lea.sflag [#allocation3], %s764
          %s766 = sand.u32 %s72, 1
          %s767 = smul.addr %s766, 4
          %s768 = scalar_lea.vmem [#allocation2], %s767
          %769 = dma.done %s765, 64
        $region40: #{tpu_custom_call.1} parent=35 // pred_fallthru
          _
      $region36: #{tpu_custom_call.1} parent=5 // pred_fallthru
        _
    $region6: #{tpu_custom_call.1} parent=1 // loop_footer
      %s15 = sadd.s32 1, %s11
    $region7: #{tpu_custom_call.1} parent=1 // loop_footer_branch
      %10 = sbr.rel target = $region3
    $region8: #{tpu_custom_call.1} parent=1 // loop_exit
      _
    %770 = vsyncpa [#allocation3], 1
    %s771 = scalar_lea.sflag [#allocation3], 1
    %772 = vsyncpa %s771, 1

</llo_original>
